<compile_context>
chip_gen: v6e
topology: v6e:2x2x1
jax: 0.10.0
libtpu: 0.0.40
codegen_flags: <defaults>
</compile_context>

<pallas_src>
import functools

import jax
import jax.numpy as jnp
from jax.experimental import pallas as pl
from jax.experimental.pallas import tpu as pltpu

_LANE = 128
_SUBLANE = 8


def _round_up(x, m):
    return (x + m - 1) // m * m


def _mlp_kernel(training, *refs):
    if training:
        seed_ref, refs = refs[0], refs[1:]
    (x_ref,
     w1_ref, b1_ref, w2_ref, b2_ref, w3_ref, b3_ref,
     w4_ref, b4_ref, w5_ref, b5_ref, w6_ref, b6_ref,
     o_ref) = refs

    x = x_ref[...].astype(jnp.float32)

    if training:
        # Dropout(p=0.5) on the input (matches Net.forward: x = self.dropout(x)).
        # Inverted dropout: keep w.p. 0.5, scale kept activations by 2.
        pltpu.prng_seed(seed_ref[0] + pl.program_id(0))      # per-tile stream
        bits = pltpu.prng_random_bits(x.shape)               # uint32
        keep = bits < jnp.uint32(1 << 31)                    # full 32-bit threshold
        x = jnp.where(keep, x * jnp.float32(2.0), jnp.float32(0.0))
    # else: eval-mode dropout is identity.

    def dense(h, w_ref, b_ref, relu):
        # bf16 operands on the MXU, f32 accumulation; bias add + ReLU on the VPU.
        y = jnp.dot(h.astype(w_ref.dtype), w_ref[...],
                    preferred_element_type=jnp.float32)
        y = y + b_ref[...]                                   # (1, out) broadcasts
        if relu:
            y = jnp.maximum(y, 0.0)
        return y

    h = dense(x, w1_ref, b1_ref, relu=True)
    h = dense(h, w2_ref, b2_ref, relu=True)
    h = dense(h, w3_ref, b3_ref, relu=True)
    h = dense(h, w4_ref, b4_ref, relu=True)
    h = dense(h, w5_ref, b5_ref, relu=True)
    h = dense(h, w6_ref, b6_ref, relu=False)

    o_ref[...] = h.astype(o_ref.dtype)


def mlp_forward(x, params, *, seed=0, training=False, tile_b=256,
                param_dtype=jnp.bfloat16):
    """Fused forward pass. params = [(w1,b1), ..., (w6,b6)], w: (in,out), b: (out,)."""
    B, n_feature = x.shape
    n_output = params[-1][0].shape[1]

    # Lane-dense padding: every feature / hidden / output width -> multiple of 128.
    dims = [n_feature] + [w.shape[1] for w, _ in params]
    pdims = [_round_up(d, _LANE) for d in dims]

    # Batch tile: multiple of 8 sublanes, clamped so tiny demo batches still work.
    tile_b = max(_SUBLANE,
                 _round_up(min(tile_b, _round_up(B, _SUBLANE)), _SUBLANE))
    Bp = _round_up(B, tile_b)

    xp = jnp.pad(x.astype(jnp.float32),
                 ((0, Bp - B), (0, pdims[0] - n_feature)))

    flat = []
    for (w, b), din_p, dout_p in zip(params, pdims[:-1], pdims[1:]):
        wp = jnp.pad(w.astype(param_dtype),
                     ((0, din_p - w.shape[0]), (0, dout_p - w.shape[1])))
        bp = jnp.pad(b.astype(jnp.float32), (0, dout_p - b.shape[0])).reshape(1, -1)
        flat.append(wp)
        flat.append(bp)

    grid = (Bp // tile_b,)

    # x / output tiled over the batch grid axis; index_maps take *_ to absorb
    # the scalar-prefetch ref in training mode.
    x_spec = pl.BlockSpec((tile_b, pdims[0]), lambda i, *_: (i, 0))
    o_spec = pl.BlockSpec((tile_b, pdims[-1]), lambda i, *_: (i, 0))
    # Weights/biases: full block with a constant index map -> fetched once,
    # VMEM-resident for all grid steps.
    param_specs = [pl.BlockSpec(p.shape, lambda i, *_: (0, 0)) for p in flat]

    flops = 2 * Bp * sum(a * b for a, b in zip(pdims[:-1], pdims[1:]))
    bytes_accessed = (xp.size * 4
                      + sum(int(p.size) * p.dtype.itemsize for p in flat)
                      + Bp * pdims[-1] * 4)

    kernel = functools.partial(_mlp_kernel, training)

    if training:
        num_prefetch = 1
        call_inputs = [jnp.array([seed], dtype=jnp.int32), xp] + flat
    else:
        num_prefetch = 0
        call_inputs = [xp] + flat

    out = pl.pallas_call(
        kernel,
        out_shape=jax.ShapeDtypeStruct((Bp, pdims[-1]), jnp.float32),
        grid_spec=pltpu.PrefetchScalarGridSpec(
            num_scalar_prefetch=num_prefetch,
            grid=grid,
            in_specs=[x_spec] + param_specs,
            out_specs=o_spec,
        ),
        compiler_params=pltpu.CompilerParams(
            dimension_semantics=("parallel",)),
        cost_estimate=pl.CostEstimate(flops=flops, transcendentals=0,
                                      bytes_accessed=bytes_accessed),
    )(*call_inputs)

    return out[:B, :n_output]


def _init_params(key, dims):
    """Deterministic init mirroring nn.Linear's U(-1/sqrt(fan_in), 1/sqrt(fan_in))."""
    params = []
    for fan_in, fan_out in zip(dims[:-1], dims[1:]):
        key, kw, kb = jax.random.split(key, 3)
        bound = 1.0 / jnp.sqrt(jnp.float32(fan_in))
        w = jax.random.uniform(kw, (fan_in, fan_out), jnp.float32, -bound, bound)
        b = jax.random.uniform(kb, (fan_out,), jnp.float32, -bound, bound)
        params.append((w, b))
    return params


if __name__ == "__main__":
    # Small shapes consistent with Net(n_feature, h1..h5, n_output).
    # batch=20 with tile_b=16 exercises batch padding + a 2-step grid.
    batch = 20
    n_feature, h1, h2, h3, h4, h5, n_output = 32, 64, 64, 64, 64, 64, 16

    key = jax.random.PRNGKey(0)
    key, kx = jax.random.split(key)
    x = jax.random.normal(kx, (batch, n_feature), dtype=jnp.float32)

    params = _init_params(key, [n_feature, h1, h2, h3, h4, h5, n_output])

    # Eval-mode forward (dropout = identity), matching model.eval() semantics.
    out = mlp_forward(x, params, training=False, tile_b=16)
    out = jax.block_until_ready(out)

    # Pure-JAX reference with the same bf16 weights / f32 accumulation.
    ref = x
    for i, (w, b) in enumerate(params):
        ref = jnp.dot(ref.astype(jnp.bfloat16), w.astype(jnp.bfloat16),
                      preferred_element_type=jnp.float32) + b
        if i < len(params) - 1:
            ref = jnp.maximum(ref, 0.0)

    assert out.shape == (batch, n_output)
    assert jnp.allclose(out, ref, atol=1e-3, rtol=1e-3), \
        float(jnp.max(jnp.abs(out - ref)))

    print("KERNEL_OK")
</pallas_src>

<mosaic_0001>
module attributes {stable_mosaic.version = 11 : i64} {
  func.func @_mlp_kernel(%arg0: i32, %arg1: memref<16x128xf32, #tpu.memory_space<vmem>>, %arg2: memref<128x128xbf16, #tpu.memory_space<vmem>>, %arg3: memref<1x128xf32, #tpu.memory_space<vmem>>, %arg4: memref<128x128xbf16, #tpu.memory_space<vmem>>, %arg5: memref<1x128xf32, #tpu.memory_space<vmem>>, %arg6: memref<128x128xbf16, #tpu.memory_space<vmem>>, %arg7: memref<1x128xf32, #tpu.memory_space<vmem>>, %arg8: memref<128x128xbf16, #tpu.memory_space<vmem>>, %arg9: memref<1x128xf32, #tpu.memory_space<vmem>>, %arg10: memref<128x128xbf16, #tpu.memory_space<vmem>>, %arg11: memref<1x128xf32, #tpu.memory_space<vmem>>, %arg12: memref<128x128xbf16, #tpu.memory_space<vmem>>, %arg13: memref<1x128xf32, #tpu.memory_space<vmem>>, %arg14: memref<16x128xf32, #tpu.memory_space<vmem>>) attributes {dimension_semantics = [#tpu.dimension_semantics<parallel>], iteration_bounds = array<i64: 2>, scalar_prefetch = 0 : i64, scratch_operands = 0 : i64, tpu.core_type = #tpu.core_type<tc>, window_params = [{transform_indices = @transform_0, window_bounds = array<i64: 16, 128>}, {pipeline_mode = #tpu.pipeline_mode<synchronous>, transform_indices = @transform_1, window_bounds = array<i64: 128, 128>}, {pipeline_mode = #tpu.pipeline_mode<synchronous>, transform_indices = @transform_2, window_bounds = array<i64: 1, 128>}, {pipeline_mode = #tpu.pipeline_mode<synchronous>, transform_indices = @transform_3, window_bounds = array<i64: 128, 128>}, {pipeline_mode = #tpu.pipeline_mode<synchronous>, transform_indices = @transform_4, window_bounds = array<i64: 1, 128>}, {pipeline_mode = #tpu.pipeline_mode<synchronous>, transform_indices = @transform_5, window_bounds = array<i64: 128, 128>}, {pipeline_mode = #tpu.pipeline_mode<synchronous>, transform_indices = @transform_6, window_bounds = array<i64: 1, 128>}, {pipeline_mode = #tpu.pipeline_mode<synchronous>, transform_indices = @transform_7, window_bounds = array<i64: 128, 128>}, {pipeline_mode = #tpu.pipeline_mode<synchronous>, transform_indices = @transform_8, window_bounds = array<i64: 1, 128>}, {pipeline_mode = #tpu.pipeline_mode<synchronous>, transform_indices = @transform_9, window_bounds = array<i64: 128, 128>}, {pipeline_mode = #tpu.pipeline_mode<synchronous>, transform_indices = @transform_10, window_bounds = array<i64: 1, 128>}, {pipeline_mode = #tpu.pipeline_mode<synchronous>, transform_indices = @transform_11, window_bounds = array<i64: 128, 128>}, {pipeline_mode = #tpu.pipeline_mode<synchronous>, transform_indices = @transform_12, window_bounds = array<i64: 1, 128>}, {transform_indices = @transform_13, window_bounds = array<i64: 16, 128>}]} {
    %c0 = arith.constant 0 : index
    %c0_0 = arith.constant 0 : index
    %0 = vector.load %arg1[%c0, %c0_0] : memref<16x128xf32, #tpu.memory_space<vmem>>, vector<16x128xf32>
    %1 = arith.truncf %0 : vector<16x128xf32> to vector<16x128xbf16>
    %c0_1 = arith.constant 0 : index
    %c0_2 = arith.constant 0 : index
    %2 = vector.load %arg2[%c0_1, %c0_2] : memref<128x128xbf16, #tpu.memory_space<vmem>>, vector<128x128xbf16>
    %cst = arith.constant dense<0.000000e+00> : vector<16x128xf32>
    %3 = tpu.matmul %1, %2, %cst {dimension_numbers = #tpu.dot_dimension_numbers<[1], [0], [0], [1], [0, 0, 1, 1], [], []>} : vector<16x128xbf16>, vector<128x128xbf16>, vector<16x128xf32> -> vector<16x128xf32>
    %c0_3 = arith.constant 0 : index
    %c0_4 = arith.constant 0 : index
    %4 = vector.load %arg3[%c0_3, %c0_4] : memref<1x128xf32, #tpu.memory_space<vmem>>, vector<1x128xf32>
    %5 = vector.broadcast %4 : vector<1x128xf32> to vector<16x128xf32>
    %6 = arith.addf %3, %5 : vector<16x128xf32>
    %cst_5 = arith.constant 0.000000e+00 : f32
    %7 = vector.broadcast %cst_5 : f32 to vector<16x128xf32>
    %8 = arith.maximumf %6, %7 : vector<16x128xf32>
    %9 = arith.truncf %8 : vector<16x128xf32> to vector<16x128xbf16>
    %c0_6 = arith.constant 0 : index
    %c0_7 = arith.constant 0 : index
    %10 = vector.load %arg4[%c0_6, %c0_7] : memref<128x128xbf16, #tpu.memory_space<vmem>>, vector<128x128xbf16>
    %cst_8 = arith.constant dense<0.000000e+00> : vector<16x128xf32>
    %11 = tpu.matmul %9, %10, %cst_8 {dimension_numbers = #tpu.dot_dimension_numbers<[1], [0], [0], [1], [0, 0, 1, 1], [], []>} : vector<16x128xbf16>, vector<128x128xbf16>, vector<16x128xf32> -> vector<16x128xf32>
    %c0_9 = arith.constant 0 : index
    %c0_10 = arith.constant 0 : index
    %12 = vector.load %arg5[%c0_9, %c0_10] : memref<1x128xf32, #tpu.memory_space<vmem>>, vector<1x128xf32>
    %13 = vector.broadcast %12 : vector<1x128xf32> to vector<16x128xf32>
    %14 = arith.addf %11, %13 : vector<16x128xf32>
    %cst_11 = arith.constant 0.000000e+00 : f32
    %15 = vector.broadcast %cst_11 : f32 to vector<16x128xf32>
    %16 = arith.maximumf %14, %15 : vector<16x128xf32>
    %17 = arith.truncf %16 : vector<16x128xf32> to vector<16x128xbf16>
    %c0_12 = arith.constant 0 : index
    %c0_13 = arith.constant 0 : index
    %18 = vector.load %arg6[%c0_12, %c0_13] : memref<128x128xbf16, #tpu.memory_space<vmem>>, vector<128x128xbf16>
    %cst_14 = arith.constant dense<0.000000e+00> : vector<16x128xf32>
    %19 = tpu.matmul %17, %18, %cst_14 {dimension_numbers = #tpu.dot_dimension_numbers<[1], [0], [0], [1], [0, 0, 1, 1], [], []>} : vector<16x128xbf16>, vector<128x128xbf16>, vector<16x128xf32> -> vector<16x128xf32>
    %c0_15 = arith.constant 0 : index
    %c0_16 = arith.constant 0 : index
    %20 = vector.load %arg7[%c0_15, %c0_16] : memref<1x128xf32, #tpu.memory_space<vmem>>, vector<1x128xf32>
    %21 = vector.broadcast %20 : vector<1x128xf32> to vector<16x128xf32>
    %22 = arith.addf %19, %21 : vector<16x128xf32>
    %cst_17 = arith.constant 0.000000e+00 : f32
    %23 = vector.broadcast %cst_17 : f32 to vector<16x128xf32>
    %24 = arith.maximumf %22, %23 : vector<16x128xf32>
    %25 = arith.truncf %24 : vector<16x128xf32> to vector<16x128xbf16>
    %c0_18 = arith.constant 0 : index
    %c0_19 = arith.constant 0 : index
    %26 = vector.load %arg8[%c0_18, %c0_19] : memref<128x128xbf16, #tpu.memory_space<vmem>>, vector<128x128xbf16>
    %cst_20 = arith.constant dense<0.000000e+00> : vector<16x128xf32>
    %27 = tpu.matmul %25, %26, %cst_20 {dimension_numbers = #tpu.dot_dimension_numbers<[1], [0], [0], [1], [0, 0, 1, 1], [], []>} : vector<16x128xbf16>, vector<128x128xbf16>, vector<16x128xf32> -> vector<16x128xf32>
    %c0_21 = arith.constant 0 : index
    %c0_22 = arith.constant 0 : index
    %28 = vector.load %arg9[%c0_21, %c0_22] : memref<1x128xf32, #tpu.memory_space<vmem>>, vector<1x128xf32>
    %29 = vector.broadcast %28 : vector<1x128xf32> to vector<16x128xf32>
    %30 = arith.addf %27, %29 : vector<16x128xf32>
    %cst_23 = arith.constant 0.000000e+00 : f32
    %31 = vector.broadcast %cst_23 : f32 to vector<16x128xf32>
    %32 = arith.maximumf %30, %31 : vector<16x128xf32>
    %33 = arith.truncf %32 : vector<16x128xf32> to vector<16x128xbf16>
    %c0_24 = arith.constant 0 : index
    %c0_25 = arith.constant 0 : index
    %34 = vector.load %arg10[%c0_24, %c0_25] : memref<128x128xbf16, #tpu.memory_space<vmem>>, vector<128x128xbf16>
    %cst_26 = arith.constant dense<0.000000e+00> : vector<16x128xf32>
    %35 = tpu.matmul %33, %34, %cst_26 {dimension_numbers = #tpu.dot_dimension_numbers<[1], [0], [0], [1], [0, 0, 1, 1], [], []>} : vector<16x128xbf16>, vector<128x128xbf16>, vector<16x128xf32> -> vector<16x128xf32>
    %c0_27 = arith.constant 0 : index
    %c0_28 = arith.constant 0 : index
    %36 = vector.load %arg11[%c0_27, %c0_28] : memref<1x128xf32, #tpu.memory_space<vmem>>, vector<1x128xf32>
    %37 = vector.broadcast %36 : vector<1x128xf32> to vector<16x128xf32>
    %38 = arith.addf %35, %37 : vector<16x128xf32>
    %cst_29 = arith.constant 0.000000e+00 : f32
    %39 = vector.broadcast %cst_29 : f32 to vector<16x128xf32>
    %40 = arith.maximumf %38, %39 : vector<16x128xf32>
    %41 = arith.truncf %40 : vector<16x128xf32> to vector<16x128xbf16>
    %c0_30 = arith.constant 0 : index
    %c0_31 = arith.constant 0 : index
    %42 = vector.load %arg12[%c0_30, %c0_31] : memref<128x128xbf16, #tpu.memory_space<vmem>>, vector<128x128xbf16>
    %cst_32 = arith.constant dense<0.000000e+00> : vector<16x128xf32>
    %43 = tpu.matmul %41, %42, %cst_32 {dimension_numbers = #tpu.dot_dimension_numbers<[1], [0], [0], [1], [0, 0, 1, 1], [], []>} : vector<16x128xbf16>, vector<128x128xbf16>, vector<16x128xf32> -> vector<16x128xf32>
    %c0_33 = arith.constant 0 : index
    %c0_34 = arith.constant 0 : index
    %44 = vector.load %arg13[%c0_33, %c0_34] : memref<1x128xf32, #tpu.memory_space<vmem>>, vector<1x128xf32>
    %45 = vector.broadcast %44 : vector<1x128xf32> to vector<16x128xf32>
    %46 = arith.addf %43, %45 : vector<16x128xf32>
    %c0_35 = arith.constant 0 : index
    %c0_36 = arith.constant 0 : index
    %47 = vector.load %arg14[%c0_35, %c0_36] : memref<16x128xf32, #tpu.memory_space<vmem>>, vector<16x128xf32>
    tpu.vector_store %arg14[%c0_35, %c0_36], %46 {strides = array<i32>} : memref<16x128xf32, #tpu.memory_space<vmem>>, vector<16x128xf32>,
    return
  }
  func.func @transform_0(%arg0: i32) -> (i32, i32) {
    %c0_i32 = arith.constant 0 : i32
    %c0_i32_0 = arith.constant 0 : i32
    return %arg0, %c0_i32 : i32, i32
  }
  func.func @transform_1(%arg0: i32) -> (i32, i32) {
    %c0_i32 = arith.constant 0 : i32
    %c0_i32_0 = arith.constant 0 : i32
    %c0_i32_1 = arith.constant 0 : i32
    return %c0_i32, %c0_i32_0 : i32, i32
  }
  func.func @transform_2(%arg0: i32) -> (i32, i32) {
    %c0_i32 = arith.constant 0 : i32
    %c0_i32_0 = arith.constant 0 : i32
    %c0_i32_1 = arith.constant 0 : i32
    return %c0_i32, %c0_i32_0 : i32, i32
  }
  func.func @transform_3(%arg0: i32) -> (i32, i32) {
    %c0_i32 = arith.constant 0 : i32
    %c0_i32_0 = arith.constant 0 : i32
    %c0_i32_1 = arith.constant 0 : i32
    return %c0_i32, %c0_i32_0 : i32, i32
  }
  func.func @transform_4(%arg0: i32) -> (i32, i32) {
    %c0_i32 = arith.constant 0 : i32
    %c0_i32_0 = arith.constant 0 : i32
    %c0_i32_1 = arith.constant 0 : i32
    return %c0_i32, %c0_i32_0 : i32, i32
  }
  func.func @transform_5(%arg0: i32) -> (i32, i32) {
    %c0_i32 = arith.constant 0 : i32
    %c0_i32_0 = arith.constant 0 : i32
    %c0_i32_1 = arith.constant 0 : i32
    return %c0_i32, %c0_i32_0 : i32, i32
  }
  func.func @transform_6(%arg0: i32) -> (i32, i32) {
    %c0_i32 = arith.constant 0 : i32
    %c0_i32_0 = arith.constant 0 : i32
    %c0_i32_1 = arith.constant 0 : i32
    return %c0_i32, %c0_i32_0 : i32, i32
  }
  func.func @transform_7(%arg0: i32) -> (i32, i32) {
    %c0_i32 = arith.constant 0 : i32
    %c0_i32_0 = arith.constant 0 : i32
    %c0_i32_1 = arith.constant 0 : i32
    return %c0_i32, %c0_i32_0 : i32, i32
  }
  func.func @transform_8(%arg0: i32) -> (i32, i32) {
    %c0_i32 = arith.constant 0 : i32
    %c0_i32_0 = arith.constant 0 : i32
    %c0_i32_1 = arith.constant 0 : i32
    return %c0_i32, %c0_i32_0 : i32, i32
  }
  func.func @transform_9(%arg0: i32) -> (i32, i32) {
    %c0_i32 = arith.constant 0 : i32
    %c0_i32_0 = arith.constant 0 : i32
    %c0_i32_1 = arith.constant 0 : i32
    return %c0_i32, %c0_i32_0 : i32, i32
  }
  func.func @transform_10(%arg0: i32) -> (i32, i32) {
    %c0_i32 = arith.constant 0 : i32
    %c0_i32_0 = arith.constant 0 : i32
    %c0_i32_1 = arith.constant 0 : i32
    return %c0_i32, %c0_i32_0 : i32, i32
  }
  func.func @transform_11(%arg0: i32) -> (i32, i32) {
    %c0_i32 = arith.constant 0 : i32
    %c0_i32_0 = arith.constant 0 : i32
    %c0_i32_1 = arith.constant 0 : i32
    return %c0_i32, %c0_i32_0 : i32, i32
  }
  func.func @transform_12(%arg0: i32) -> (i32, i32) {
    %c0_i32 = arith.constant 0 : i32
    %c0_i32_0 = arith.constant 0 : i32
    %c0_i32_1 = arith.constant 0 : i32
    return %c0_i32, %c0_i32_0 : i32, i32
  }
  func.func @transform_13(%arg0: i32) -> (i32, i32) {
    %c0_i32 = arith.constant 0 : i32
    %c0_i32_0 = arith.constant 0 : i32
    return %arg0, %c0_i32 : i32, i32
  }
}

</mosaic_0001>

<llo_original>
// kernel: tpu_custom_call.1
$region0: #{tpu_custom_call.1}
  #allocation0 [shape = 'u32[]', space=smem, size = 0x4, offset = 0x4, fixed_abs, tag = 'smem constant byte address 0x4 - core index']
  #allocation1 [shape = 'u32[144,128]{1,0:T(1,128)}', space=vmem, size = 0x12000, scoped, tag = 'internal scratch']
  %s0 = inlined_call_operand.hbm [shape: f32[32,128], index: 0, kind: input, shape index: {}]
  %s1 = inlined_call_operand.hbm [shape: bf16[128,128], index: 1, kind: input, shape index: {}]
  %s2 = inlined_call_operand.vmem [shape: f32[1,128], index: 2, kind: input, shape index: {}]
  %s3 = inlined_call_operand.hbm [shape: bf16[128,128], index: 3, kind: input, shape index: {}]
  %s4 = inlined_call_operand.vmem [shape: f32[1,128], index: 4, kind: input, shape index: {}]
  %s5 = inlined_call_operand.hbm [shape: bf16[128,128], index: 5, kind: input, shape index: {}]
  %s6 = inlined_call_operand.vmem [shape: f32[1,128], index: 6, kind: input, shape index: {}]
  %s7 = inlined_call_operand.hbm [shape: bf16[128,128], index: 7, kind: input, shape index: {}]
  %s8 = inlined_call_operand.vmem [shape: f32[1,128], index: 8, kind: input, shape index: {}]
  %s9 = inlined_call_operand.hbm [shape: bf16[128,128], index: 9, kind: input, shape index: {}]
  %s10 = inlined_call_operand.vmem [shape: f32[1,128], index: 10, kind: input, shape index: {}]
  %s11 = inlined_call_operand.hbm [shape: bf16[128,128], index: 11, kind: input, shape index: {}]
  %s12 = inlined_call_operand.vmem [shape: f32[1,128], index: 12, kind: input, shape index: {}]
  %s13 = inlined_call_operand.hbm [shape: f32[32,128], index: 13, kind: output, shape index: {}]
  %s14 = sld [smem:[#allocation0]]
  $region113: #{tpu_custom_call.1} parent=0
    _
  %s16 = ssub.s32 1, %s14
  %s17 = scalar_select 0, %s16, %s14
  $region1: #{tpu_custom_call.1} parent=0
    #allocation2 [shape = 'u8[16384]{0}', space=vmem, size = 0x4000, scoped, tag = 'input window, operand 0']
    #allocation3 [shape = 's32[2]{0}', space=sflag, size = 0x8, scoped, tag = 'scoped memory for tpu_custom_call.1']
    #allocation4 [shape = 's32[2]{0}', space=sflag, size = 0x8, scoped, tag = 'scoped memory for tpu_custom_call.1']
    #allocation5 [shape = 'u8[32768]{0}', space=vmem, size = 0x8000, scoped, tag = 'input window, operand 1, single buffered']
    #allocation6 [shape = 's32[1]{0}', space=sflag, size = 0x4, scoped, tag = 'scoped memory for tpu_custom_call.1']
    #allocation7 [shape = 'u8[32768]{0}', space=vmem, size = 0x8000, scoped, tag = 'input window, operand 3, single buffered']
    #allocation8 [shape = 'u8[32768]{0}', space=vmem, size = 0x8000, scoped, tag = 'input window, operand 5, single buffered']
    #allocation9 [shape = 's32[1]{0}', space=sflag, size = 0x4, scoped, tag = 'scoped memory for tpu_custom_call.1']
    #allocation10 [shape = 'u8[32768]{0}', space=vmem, size = 0x8000, scoped, tag = 'input window, operand 7, single buffered']
    #allocation11 [shape = 'u8[32768]{0}', space=vmem, size = 0x8000, scoped, tag = 'input window, operand 9, single buffered']
    #allocation12 [shape = 's32[1]{0}', space=sflag, size = 0x4, scoped, tag = 'scoped memory for tpu_custom_call.1']
    #allocation13 [shape = 'u8[32768]{0}', space=vmem, size = 0x8000, scoped, tag = 'input window, operand 11, single buffered']
    #allocation14 [shape = 'u8[16384]{0}', space=vmem, size = 0x4000, scoped, tag = 'output window, operand 0']
    %18 = vsyncpa [#allocation3], 0
    %s19 = scalar_lea.sflag [#allocation3], 1
    %20 = vsyncpa %s19, 0
    %21 = vsyncpa [#allocation6], 0
    %22 = vsyncpa [#allocation9], 0
    %23 = vsyncpa [#allocation12], 0
    %24 = vsyncpa [#allocation4], 0
    %s25 = scalar_lea.sflag [#allocation4], 1
    %26 = vsyncpa %s25, 0
    loop: start=0, step=1, limit=4
    $region2: #{tpu_custom_call.1} parent=1 // loop_pre_header
      _
    $region3: #{tpu_custom_call.1} parent=1 // loop_header
      %s28 = sphi 0, %s32
      %p29 = scmp.ge.s32.totalorder %s28, 4
      %s38 = sphi 0, %s40
      %s41 = sphi 0, %s38
      %s42 = sphi 0, %s41
      %s58 = sphi 0, %s42
      %s62 = sphi 0, %s62
      %s64 = sphi 0, %s62
      %s65 = sphi 0, %s64
      %s79 = sphi 0, %s65
      %s83 = sphi 0, %s83
      %s85 = sphi 0, %s83
      %s86 = sphi 0, %s85
      %s100 = sphi 0, %s86
      %s104 = sphi 0, %s104
      %s106 = sphi 0, %s104
      %s107 = sphi 0, %s106
      %s121 = sphi 0, %s107
      %s125 = sphi 0, %s125
      %s127 = sphi 0, %s125
      %s128 = sphi 0, %s127
      %s142 = sphi 0, %s128
      %s146 = sphi 0, %s146
      %s148 = sphi 0, %s146
      %s149 = sphi 0, %s148
      %s163 = sphi 0, %s149
      %s167 = sphi 0, %s167
      %s169 = sphi 0, %s167
      %s170 = sphi 0, %s169
      %s184 = sphi 0, %s170
      %s188 = sphi 0, %s188
      %s190 = sphi 0, %s188
      %s191 = sphi 0, %s190
      %s205 = sphi 0, %s191
      %s209 = sphi 0, %s209
      %s211 = sphi 0, %s209
      %s212 = sphi 0, %s211
      %s226 = sphi 0, %s212
      %s230 = sphi 0, %s230
      %s232 = sphi 0, %s230
      %s233 = sphi 0, %s232
      %s247 = sphi 0, %s233
      %s251 = sphi 0, %s251
      %s253 = sphi 0, %s251
      %s254 = sphi 0, %s253
      %s268 = sphi 0, %s254
      %s272 = sphi 0, %s272
      %s274 = sphi 0, %s272
      %s275 = sphi 0, %s274
      %s289 = sphi 0, %s275
      %s293 = sphi 0, %s293
      %s295 = sphi 0, %s293
      %s296 = sphi 0, %s295
      %s310 = sphi 0, %s296
      %s316 = sphi 0, %s318
      %s319 = sphi 0, %s316
      %s320 = sphi 0, %s319
      %s336 = sphi 0, %s320
    $region4: #{tpu_custom_call.1} parent=1 // loop_header_branch
      %31 = sbr.rel (%p29) target = $region8
    $region5: #{tpu_custom_call.1} parent=1 // loop_body
      %s33 = ssub.s32 %s28, 1
      %s34 = ssub.s32 %s28, 2
      %s35 = sadd.s32 %s28, 1
      %s36 = ssub.s32 %s28, %s35
      %p37 = scmp.eq.s32.totalorder %s36, 0
      %s39 = sadd.s32 %s38, 1
      %s40 = scalar_select %p37, %s38, %s39
      %p43 = pneg %p37
      %p44 = scmp.eq.s32.totalorder %s28, 1
      %p45 = por %p43, %p44
      %p46 = scmp.ne.s32.totalorder %s38, %s41
      %p47 = scmp.eq.s32.totalorder %s28, 0
      %p48 = por %p46, %p47
      %p49 = scmp.ne.s32.totalorder %s38, %s41
      %p50 = scmp.eq.s32.totalorder %s33, 1
      %p51 = por %p49, %p50
      %p52 = scmp.ne.s32.totalorder %s41, %s42
      %p53 = scmp.eq.s32.totalorder %s33, 0
      %p54 = por %p52, %p53
      %p55 = scmp.ne.s32.totalorder %s41, %s42
      %p56 = scmp.eq.s32.totalorder %s34, 1
      %p57 = por %p55, %p56
      %p59 = scmp.ne.s32.totalorder %s42, %s58
      %p60 = scmp.eq.s32.totalorder %s34, 0
      %p61 = por %p59, %p60
      %s63 = sadd.s32 %s62, 1
      %p66 = scmp.eq.s32.totalorder %s28, 1
      %p67 = scmp.ne.s32.totalorder %s62, %s64
      %p68 = scmp.eq.s32.totalorder %s28, 0
      %p69 = por %p67, %p68
      %p70 = scmp.ne.s32.totalorder %s62, %s64
      %p71 = scmp.eq.s32.totalorder %s33, 1
      %p72 = por %p70, %p71
      %p73 = scmp.ne.s32.totalorder %s64, %s65
      %p74 = scmp.eq.s32.totalorder %s33, 0
      %p75 = por %p73, %p74
      %p76 = scmp.ne.s32.totalorder %s64, %s65
      %p77 = scmp.eq.s32.totalorder %s34, 1
      %p78 = por %p76, %p77
      %p80 = scmp.ne.s32.totalorder %s65, %s79
      %p81 = scmp.eq.s32.totalorder %s34, 0
      %p82 = por %p80, %p81
      %s84 = sadd.s32 %s83, 1
      %p87 = scmp.eq.s32.totalorder %s28, 1
      %p88 = scmp.ne.s32.totalorder %s83, %s85
      %p89 = scmp.eq.s32.totalorder %s28, 0
      %p90 = por %p88, %p89
      %p91 = scmp.ne.s32.totalorder %s83, %s85
      %p92 = scmp.eq.s32.totalorder %s33, 1
      %p93 = por %p91, %p92
      %p94 = scmp.ne.s32.totalorder %s85, %s86
      %p95 = scmp.eq.s32.totalorder %s33, 0
      %p96 = por %p94, %p95
      %p97 = scmp.ne.s32.totalorder %s85, %s86
      %p98 = scmp.eq.s32.totalorder %s34, 1
      %p99 = por %p97, %p98
      %p101 = scmp.ne.s32.totalorder %s86, %s100
      %p102 = scmp.eq.s32.totalorder %s34, 0
      %p103 = por %p101, %p102
      %s105 = sadd.s32 %s104, 1
      %p108 = scmp.eq.s32.totalorder %s28, 1
      %p109 = scmp.ne.s32.totalorder %s104, %s106
      %p110 = scmp.eq.s32.totalorder %s28, 0
      %p111 = por %p109, %p110
      %p112 = scmp.ne.s32.totalorder %s104, %s106
      %p113 = scmp.eq.s32.totalorder %s33, 1
      %p114 = por %p112, %p113
      %p115 = scmp.ne.s32.totalorder %s106, %s107
      %p116 = scmp.eq.s32.totalorder %s33, 0
      %p117 = por %p115, %p116
      %p118 = scmp.ne.s32.totalorder %s106, %s107
      %p119 = scmp.eq.s32.totalorder %s34, 1
      %p120 = por %p118, %p119
      %p122 = scmp.ne.s32.totalorder %s107, %s121
      %p123 = scmp.eq.s32.totalorder %s34, 0
      %p124 = por %p122, %p123
      %s126 = sadd.s32 %s125, 1
      %p129 = scmp.eq.s32.totalorder %s28, 1
      %p130 = scmp.ne.s32.totalorder %s125, %s127
      %p131 = scmp.eq.s32.totalorder %s28, 0
      %p132 = por %p130, %p131
      %p133 = scmp.ne.s32.totalorder %s125, %s127
      %p134 = scmp.eq.s32.totalorder %s33, 1
      %p135 = por %p133, %p134
      %p136 = scmp.ne.s32.totalorder %s127, %s128
      %p137 = scmp.eq.s32.totalorder %s33, 0
      %p138 = por %p136, %p137
      %p139 = scmp.ne.s32.totalorder %s127, %s128
      %p140 = scmp.eq.s32.totalorder %s34, 1
      %p141 = por %p139, %p140
      %p143 = scmp.ne.s32.totalorder %s128, %s142
      %p144 = scmp.eq.s32.totalorder %s34, 0
      %p145 = por %p143, %p144
      %s147 = sadd.s32 %s146, 1
      %p150 = scmp.eq.s32.totalorder %s28, 1
      %p151 = scmp.ne.s32.totalorder %s146, %s148
      %p152 = scmp.eq.s32.totalorder %s28, 0
      %p153 = por %p151, %p152
      %p154 = scmp.ne.s32.totalorder %s146, %s148
      %p155 = scmp.eq.s32.totalorder %s33, 1
      %p156 = por %p154, %p155
      %p157 = scmp.ne.s32.totalorder %s148, %s149
      %p158 = scmp.eq.s32.totalorder %s33, 0
      %p159 = por %p157, %p158
      %p160 = scmp.ne.s32.totalorder %s148, %s149
      %p161 = scmp.eq.s32.totalorder %s34, 1
      %p162 = por %p160, %p161
      %p164 = scmp.ne.s32.totalorder %s149, %s163
      %p165 = scmp.eq.s32.totalorder %s34, 0
      %p166 = por %p164, %p165
      %s168 = sadd.s32 %s167, 1
      %p171 = scmp.eq.s32.totalorder %s28, 1
      %p172 = scmp.ne.s32.totalorder %s167, %s169
      %p173 = scmp.eq.s32.totalorder %s28, 0
      %p174 = por %p172, %p173
      %p175 = scmp.ne.s32.totalorder %s167, %s169
      %p176 = scmp.eq.s32.totalorder %s33, 1
      %p177 = por %p175, %p176
      %p178 = scmp.ne.s32.totalorder %s169, %s170
      %p179 = scmp.eq.s32.totalorder %s33, 0
      %p180 = por %p178, %p179
      %p181 = scmp.ne.s32.totalorder %s169, %s170
      %p182 = scmp.eq.s32.totalorder %s34, 1
      %p183 = por %p181, %p182
      %p185 = scmp.ne.s32.totalorder %s170, %s184
      %p186 = scmp.eq.s32.totalorder %s34, 0
      %p187 = por %p185, %p186
      %s189 = sadd.s32 %s188, 1
      %p192 = scmp.eq.s32.totalorder %s28, 1
      %p193 = scmp.ne.s32.totalorder %s188, %s190
      %p194 = scmp.eq.s32.totalorder %s28, 0
      %p195 = por %p193, %p194
      %p196 = scmp.ne.s32.totalorder %s188, %s190
      %p197 = scmp.eq.s32.totalorder %s33, 1
      %p198 = por %p196, %p197
      %p199 = scmp.ne.s32.totalorder %s190, %s191
      %p200 = scmp.eq.s32.totalorder %s33, 0
      %p201 = por %p199, %p200
      %p202 = scmp.ne.s32.totalorder %s190, %s191
      %p203 = scmp.eq.s32.totalorder %s34, 1
      %p204 = por %p202, %p203
      %p206 = scmp.ne.s32.totalorder %s191, %s205
      %p207 = scmp.eq.s32.totalorder %s34, 0
      %p208 = por %p206, %p207
      %s210 = sadd.s32 %s209, 1
      %p213 = scmp.eq.s32.totalorder %s28, 1
      %p214 = scmp.ne.s32.totalorder %s209, %s211
      %p215 = scmp.eq.s32.totalorder %s28, 0
      %p216 = por %p214, %p215
      %p217 = scmp.ne.s32.totalorder %s209, %s211
      %p218 = scmp.eq.s32.totalorder %s33, 1
      %p219 = por %p217, %p218
      %p220 = scmp.ne.s32.totalorder %s211, %s212
      %p221 = scmp.eq.s32.totalorder %s33, 0
      %p222 = por %p220, %p221
      %p223 = scmp.ne.s32.totalorder %s211, %s212
      %p224 = scmp.eq.s32.totalorder %s34, 1
      %p225 = por %p223, %p224
      %p227 = scmp.ne.s32.totalorder %s212, %s226
      %p228 = scmp.eq.s32.totalorder %s34, 0
      %p229 = por %p227, %p228
      %s231 = sadd.s32 %s230, 1
      %p234 = scmp.eq.s32.totalorder %s28, 1
      %p235 = scmp.ne.s32.totalorder %s230, %s232
      %p236 = scmp.eq.s32.totalorder %s28, 0
      %p237 = por %p235, %p236
      %p238 = scmp.ne.s32.totalorder %s230, %s232
      %p239 = scmp.eq.s32.totalorder %s33, 1
      %p240 = por %p238, %p239
      %p241 = scmp.ne.s32.totalorder %s232, %s233
      %p242 = scmp.eq.s32.totalorder %s33, 0
      %p243 = por %p241, %p242
      %p244 = scmp.ne.s32.totalorder %s232, %s233
      %p245 = scmp.eq.s32.totalorder %s34, 1
      %p246 = por %p244, %p245
      %p248 = scmp.ne.s32.totalorder %s233, %s247
      %p249 = scmp.eq.s32.totalorder %s34, 0
      %p250 = por %p248, %p249
      %s252 = sadd.s32 %s251, 1
      %p255 = scmp.eq.s32.totalorder %s28, 1
      %p256 = scmp.ne.s32.totalorder %s251, %s253
      %p257 = scmp.eq.s32.totalorder %s28, 0
      %p258 = por %p256, %p257
      %p259 = scmp.ne.s32.totalorder %s251, %s253
      %p260 = scmp.eq.s32.totalorder %s33, 1
      %p261 = por %p259, %p260
      %p262 = scmp.ne.s32.totalorder %s253, %s254
      %p263 = scmp.eq.s32.totalorder %s33, 0
      %p264 = por %p262, %p263
      %p265 = scmp.ne.s32.totalorder %s253, %s254
      %p266 = scmp.eq.s32.totalorder %s34, 1
      %p267 = por %p265, %p266
      %p269 = scmp.ne.s32.totalorder %s254, %s268
      %p270 = scmp.eq.s32.totalorder %s34, 0
      %p271 = por %p269, %p270
      %s273 = sadd.s32 %s272, 1
      %p276 = scmp.eq.s32.totalorder %s28, 1
      %p277 = scmp.ne.s32.totalorder %s272, %s274
      %p278 = scmp.eq.s32.totalorder %s28, 0
      %p279 = por %p277, %p278
      %p280 = scmp.ne.s32.totalorder %s272, %s274
      %p281 = scmp.eq.s32.totalorder %s33, 1
      %p282 = por %p280, %p281
      %p283 = scmp.ne.s32.totalorder %s274, %s275
      %p284 = scmp.eq.s32.totalorder %s33, 0
      %p285 = por %p283, %p284
      %p286 = scmp.ne.s32.totalorder %s274, %s275
      %p287 = scmp.eq.s32.totalorder %s34, 1
      %p288 = por %p286, %p287
      %p290 = scmp.ne.s32.totalorder %s275, %s289
      %p291 = scmp.eq.s32.totalorder %s34, 0
      %p292 = por %p290, %p291
      %s294 = sadd.s32 %s293, 1
      %p297 = scmp.eq.s32.totalorder %s28, 1
      %p298 = scmp.ne.s32.totalorder %s293, %s295
      %p299 = scmp.eq.s32.totalorder %s28, 0
      %p300 = por %p298, %p299
      %p301 = scmp.ne.s32.totalorder %s293, %s295
      %p302 = scmp.eq.s32.totalorder %s33, 1
      %p303 = por %p301, %p302
      %p304 = scmp.ne.s32.totalorder %s295, %s296
      %p305 = scmp.eq.s32.totalorder %s33, 0
      %p306 = por %p304, %p305
      %p307 = scmp.ne.s32.totalorder %s295, %s296
      %p308 = scmp.eq.s32.totalorder %s34, 1
      %p309 = por %p307, %p308
      %p311 = scmp.ne.s32.totalorder %s296, %s310
      %p312 = scmp.eq.s32.totalorder %s34, 0
      %p313 = por %p311, %p312
      %s314 = ssub.s32 %s28, %s35
      %p315 = scmp.eq.s32.totalorder %s314, 0
      %s317 = sadd.s32 %s316, 1
      %s318 = scalar_select %p315, %s316, %s317
      %p321 = pneg %p315
      %p322 = scmp.eq.s32.totalorder %s28, 1
      %p323 = por %p321, %p322
      %p324 = scmp.ne.s32.totalorder %s316, %s319
      %p325 = scmp.eq.s32.totalorder %s28, 0
      %p326 = por %p324, %p325
      %p327 = scmp.ne.s32.totalorder %s316, %s319
      %p328 = scmp.eq.s32.totalorder %s33, 1
      %p329 = por %p327, %p328
      %p330 = scmp.ne.s32.totalorder %s319, %s320
      %p331 = scmp.eq.s32.totalorder %s33, 0
      %p332 = por %p330, %p331
      %p333 = scmp.ne.s32.totalorder %s319, %s320
      %p334 = scmp.eq.s32.totalorder %s34, 1
      %p335 = por %p333, %p334
      %p337 = scmp.ne.s32.totalorder %s320, %s336
      %p338 = scmp.eq.s32.totalorder %s34, 0
      %p339 = por %p337, %p338
      %p340 = scmp.le.s32.totalorder 1, %s28
      %p341 = scmp.lt.s32.totalorder %s28, 3
      %p342 = pnand %p340, %p341
      %p343 = pneg %p342
      // Predicated region
      $region9: #{tpu_custom_call.1} parent=5 // pred_check
        _
      $region10: #{tpu_custom_call.1} parent=5 // pred_check_branch
        %345 = sbr.rel (%p342) target = $region12
      $region11: #{tpu_custom_call.1} parent=5 // pred_region
        %s346 = ssub.s32 %s28, 1
        // Predicated region
        $region13: #{tpu_custom_call.1} parent=11 // pred_check
          %p347 = pneg %p75
        $region14: #{tpu_custom_call.1} parent=11 // pred_check_branch
          %349 = sbr.rel (%p347) target = $region16
        $region15: #{tpu_custom_call.1} parent=11 // pred_region
          %s351 = ssub.s32 1024, 1024
          %352 = vsyncadd [#allocation6], %s351
          %s353 = sshll.u32 [#allocation5], 4
          %s354 = int_to_ptr.vmem [resolvable:$true] %s353
          %359 = dma.hbm_to_vmem [thread:$0]  %s1, 1024, %s354, [#allocation6], 64, 64, 4
        $region16: #{tpu_custom_call.1} parent=11 // pred_fallthru
          _
        // Predicated region
        $region17: #{tpu_custom_call.1} parent=11 // pred_check
          %p360 = pneg %p96
        $region18: #{tpu_custom_call.1} parent=11 // pred_check_branch
          %362 = sbr.rel (%p360) target = $region20
        $region19: #{tpu_custom_call.1} parent=11 // pred_region
          _
        $region20: #{tpu_custom_call.1} parent=11 // pred_fallthru
          _
        // Predicated region
        $region21: #{tpu_custom_call.1} parent=11 // pred_check
          %p363 = pneg %p117
        $region22: #{tpu_custom_call.1} parent=11 // pred_check_branch
          %365 = sbr.rel (%p363) target = $region24
        $region23: #{tpu_custom_call.1} parent=11 // pred_region
          %s367 = ssub.s32 1024, 1024
          %368 = vsyncadd [#allocation6], %s367
          %s369 = sshll.u32 [#allocation7], 4
          %s370 = int_to_ptr.vmem [resolvable:$true] %s369
          %375 = dma.hbm_to_vmem [thread:$0]  %s3, 1024, %s370, [#allocation6], 64, 64, 4
        $region24: #{tpu_custom_call.1} parent=11 // pred_fallthru
          _
        // Predicated region
        $region25: #{tpu_custom_call.1} parent=11 // pred_check
          %p376 = pneg %p138
        $region26: #{tpu_custom_call.1} parent=11 // pred_check_branch
          %378 = sbr.rel (%p376) target = $region28
        $region27: #{tpu_custom_call.1} parent=11 // pred_region
          _
        $region28: #{tpu_custom_call.1} parent=11 // pred_fallthru
          _
        // Predicated region
        $region29: #{tpu_custom_call.1} parent=11 // pred_check
          %p379 = pneg %p159
        $region30: #{tpu_custom_call.1} parent=11 // pred_check_branch
          %381 = sbr.rel (%p379) target = $region32
        $region31: #{tpu_custom_call.1} parent=11 // pred_region
          %s383 = ssub.s32 1024, 1024
          %384 = vsyncadd [#allocation9], %s383
          %s385 = sshll.u32 [#allocation8], 4
          %s386 = int_to_ptr.vmem [resolvable:$true] %s385
          %391 = dma.hbm_to_vmem [thread:$0]  %s5, 1024, %s386, [#allocation9], 64, 64, 4
        $region32: #{tpu_custom_call.1} parent=11 // pred_fallthru
          _
        // Predicated region
        $region33: #{tpu_custom_call.1} parent=11 // pred_check
          %p392 = pneg %p180
        $region34: #{tpu_custom_call.1} parent=11 // pred_check_branch
          %394 = sbr.rel (%p392) target = $region36
        $region35: #{tpu_custom_call.1} parent=11 // pred_region
          _
        $region36: #{tpu_custom_call.1} parent=11 // pred_fallthru
          _
        // Predicated region
        $region37: #{tpu_custom_call.1} parent=11 // pred_check
          %p395 = pneg %p201
        $region38: #{tpu_custom_call.1} parent=11 // pred_check_branch
          %397 = sbr.rel (%p395) target = $region40
        $region39: #{tpu_custom_call.1} parent=11 // pred_region
          %s399 = ssub.s32 1024, 1024
          %400 = vsyncadd [#allocation9], %s399
          %s401 = sshll.u32 [#allocation10], 4
          %s402 = int_to_ptr.vmem [resolvable:$true] %s401
          %407 = dma.hbm_to_vmem [thread:$0]  %s7, 1024, %s402, [#allocation9], 64, 64, 4
        $region40: #{tpu_custom_call.1} parent=11 // pred_fallthru
          _
        // Predicated region
        $region41: #{tpu_custom_call.1} parent=11 // pred_check
          %p408 = pneg %p222
        $region42: #{tpu_custom_call.1} parent=11 // pred_check_branch
          %410 = sbr.rel (%p408) target = $region44
        $region43: #{tpu_custom_call.1} parent=11 // pred_region
          _
        $region44: #{tpu_custom_call.1} parent=11 // pred_fallthru
          _
        // Predicated region
        $region45: #{tpu_custom_call.1} parent=11 // pred_check
          %p411 = pneg %p243
        $region46: #{tpu_custom_call.1} parent=11 // pred_check_branch
          %413 = sbr.rel (%p411) target = $region48
        $region47: #{tpu_custom_call.1} parent=11 // pred_region
          %s415 = ssub.s32 1024, 1024
          %416 = vsyncadd [#allocation12], %s415
          %s417 = sshll.u32 [#allocation11], 4
          %s418 = int_to_ptr.vmem [resolvable:$true] %s417
          %423 = dma.hbm_to_vmem [thread:$0]  %s9, 1024, %s418, [#allocation12], 64, 64, 4
        $region48: #{tpu_custom_call.1} parent=11 // pred_fallthru
          _
        // Predicated region
        $region49: #{tpu_custom_call.1} parent=11 // pred_check
          %p424 = pneg %p264
        $region50: #{tpu_custom_call.1} parent=11 // pred_check_branch
          %426 = sbr.rel (%p424) target = $region52
        $region51: #{tpu_custom_call.1} parent=11 // pred_region
          _
        $region52: #{tpu_custom_call.1} parent=11 // pred_fallthru
          _
        // Predicated region
        $region53: #{tpu_custom_call.1} parent=11 // pred_check
          %p427 = pneg %p285
        $region54: #{tpu_custom_call.1} parent=11 // pred_check_branch
          %429 = sbr.rel (%p427) target = $region56
        $region55: #{tpu_custom_call.1} parent=11 // pred_region
          %s431 = ssub.s32 1024, 1024
          %432 = vsyncadd [#allocation12], %s431
          %s433 = sshll.u32 [#allocation13], 4
          %s434 = int_to_ptr.vmem [resolvable:$true] %s433
          %439 = dma.hbm_to_vmem [thread:$0]  %s11, 1024, %s434, [#allocation12], 64, 64, 4
        $region56: #{tpu_custom_call.1} parent=11 // pred_fallthru
          _
        // Predicated region
        $region57: #{tpu_custom_call.1} parent=11 // pred_check
          %p440 = pneg %p306
        $region58: #{tpu_custom_call.1} parent=11 // pred_check_branch
          %442 = sbr.rel (%p440) target = $region60
        $region59: #{tpu_custom_call.1} parent=11 // pred_region
          _
        $region60: #{tpu_custom_call.1} parent=11 // pred_fallthru
          _
      $region12: #{tpu_custom_call.1} parent=5 // pred_fallthru
        _
      %p443 = scmp.lt.s32.totalorder %s28, 2
      // Predicated region
      $region61: #{tpu_custom_call.1} parent=5 // pred_check
        %p444 = pneg %p443
      $region62: #{tpu_custom_call.1} parent=5 // pred_check_branch
        %446 = sbr.rel (%p444) target = $region64
      $region63: #{tpu_custom_call.1} parent=5 // pred_region
        // Predicated region
        $region65: #{tpu_custom_call.1} parent=63 // pred_check
          %p447 = pneg %p48
        $region66: #{tpu_custom_call.1} parent=63 // pred_check_branch
          %449 = sbr.rel (%p447) target = $region68
        $region67: #{tpu_custom_call.1} parent=63 // pred_region
          %s450 = sand.u32 %s38, 1
          %s451 = scalar_lea.sflag [#allocation3], %s450
          %s452 = sand.u32 %s38, 1
          %s453 = smul.addr %s452, 16
          %s454 = scalar_lea.vmem [#allocation2], %s453
          %s455 = smul.u32 2, %s28
          %s457 = ssub.s32 256, 256
          %458 = vsyncadd %s451, %s457
          %s459 = smul.addr %s455, 128
          %s460 = scalar_lea.hbm %s0, %s459
          %s461 = sshll.u32 %s454, 4
          %s462 = int_to_ptr.vmem [resolvable:$true] %s461
          %467 = dma.hbm_to_vmem [thread:$0]  %s460, 256, %s462, %s451, 128, 128, 8
        $region68: #{tpu_custom_call.1} parent=63 // pred_fallthru
          _
      $region64: #{tpu_custom_call.1} parent=5 // pred_fallthru
        _
      %p468 = scmp.le.s32.totalorder 1, %s28
      %p469 = scmp.lt.s32.totalorder %s28, 3
      %p470 = pnand %p468, %p469
      %p471 = pneg %p470
      // Predicated region
      $region69: #{tpu_custom_call.1} parent=5 // pred_check
        _
      $region70: #{tpu_custom_call.1} parent=5 // pred_check_branch
        %473 = sbr.rel (%p470) target = $region72
      $region71: #{tpu_custom_call.1} parent=5 // pred_region
        %s474 = ssub.s32 %s28, 1
        %s475 = sand.u32 %s41, 1
        %s476 = scalar_lea.sflag [#allocation3], %s475
        %s477 = sand.u32 %s41, 1
        %s478 = smul.addr %s477, 16
        %s479 = scalar_lea.vmem [#allocation2], %s478
        // Predicated region
        $region73: #{tpu_custom_call.1} parent=71 // pred_check
          %p480 = pneg %p54
        $region74: #{tpu_custom_call.1} parent=71 // pred_check_branch
          %482 = sbr.rel (%p480) target = $region76
        $region75: #{tpu_custom_call.1} parent=71 // pred_region
          %483 = dma.done %s476, 256
        $region76: #{tpu_custom_call.1} parent=71 // pred_fallthru
          _
        // Predicated region
        $region77: #{tpu_custom_call.1} parent=71 // pred_check
          %p484 = pneg %p75
        $region78: #{tpu_custom_call.1} parent=71 // pred_check_branch
          %486 = sbr.rel (%p484) target = $region80
        $region79: #{tpu_custom_call.1} parent=71 // pred_region
          %487 = dma.done [#allocation6], 1024
        $region80: #{tpu_custom_call.1} parent=71 // pred_fallthru
          _
        // Predicated region
        $region81: #{tpu_custom_call.1} parent=71 // pred_check
          %p488 = pneg %p117
        $region82: #{tpu_custom_call.1} parent=71 // pred_check_branch
          %490 = sbr.rel (%p488) target = $region84
        $region83: #{tpu_custom_call.1} parent=71 // pred_region
          %491 = dma.done [#allocation6], 1024
        $region84: #{tpu_custom_call.1} parent=71 // pred_fallthru
          _
        // Predicated region
        $region85: #{tpu_custom_call.1} parent=71 // pred_check
          %p492 = pneg %p159
        $region86: #{tpu_custom_call.1} parent=71 // pred_check_branch
          %494 = sbr.rel (%p492) target = $region88
        $region87: #{tpu_custom_call.1} parent=71 // pred_region
          %495 = dma.done [#allocation9], 1024
        $region88: #{tpu_custom_call.1} parent=71 // pred_fallthru
          _
        // Predicated region
        $region89: #{tpu_custom_call.1} parent=71 // pred_check
          %p496 = pneg %p201
        $region90: #{tpu_custom_call.1} parent=71 // pred_check_branch
          %498 = sbr.rel (%p496) target = $region92
        $region91: #{tpu_custom_call.1} parent=71 // pred_region
          %499 = dma.done [#allocation9], 1024
        $region92: #{tpu_custom_call.1} parent=71 // pred_fallthru
          _
        // Predicated region
        $region93: #{tpu_custom_call.1} parent=71 // pred_check
          %p500 = pneg %p243
        $region94: #{tpu_custom_call.1} parent=71 // pred_check_branch
          %502 = sbr.rel (%p500) target = $region96
        $region95: #{tpu_custom_call.1} parent=71 // pred_region
          %503 = dma.done [#allocation12], 1024
        $region96: #{tpu_custom_call.1} parent=71 // pred_fallthru
          _
        // Predicated region
        $region97: #{tpu_custom_call.1} parent=71 // pred_check
          %p504 = pneg %p285
        $region98: #{tpu_custom_call.1} parent=71 // pred_check_branch
          %506 = sbr.rel (%p504) target = $region100
        $region99: #{tpu_custom_call.1} parent=71 // pred_region
          %507 = dma.done [#allocation12], 1024
        $region100: #{tpu_custom_call.1} parent=71 // pred_fallthru
          _
        %s508 = sand.u32 %s41, 1
        %s509 = scalar_lea.sflag [#allocation3], %s508
        %s510 = sand.u32 %s41, 1
        %s511 = smul.addr %s510, 16
        %s512 = scalar_lea.vmem [#allocation2], %s511
        %p513 = pneg %p54
        %p514 = pneg %p51
        %p515 = pneg %p75
        %p516 = pneg %p72
        %p517 = pneg %p96
        %p518 = pneg %p93
        %p519 = pneg %p117
        %p520 = pneg %p114
        %p521 = pneg %p138
        %p522 = pneg %p135
        %p523 = pneg %p159
        %p524 = pneg %p156
        %p525 = pneg %p180
        %p526 = pneg %p177
        %p527 = pneg %p201
        %p528 = pneg %p198
        %p529 = pneg %p222
        %p530 = pneg %p219
        %p531 = pneg %p243
        %p532 = pneg %p240
        %p533 = pneg %p264
        %p534 = pneg %p261
        %p535 = pneg %p285
        %p536 = pneg %p282
        %p537 = pneg %p306
        %p538 = pneg %p303
        %p539 = pneg %p332
        %p540 = pneg %p329
        %s541 = sand.u32 %s319, 1
        %s542 = scalar_lea.sflag [#allocation4], %s541
        %s543 = sand.u32 %s319, 1
        %s544 = smul.addr %s543, 16
        %s545 = scalar_lea.vmem [#allocation14], %s544
        %s546 = smul.u32 2, %s33
        %s547 = smul.u32 2, %s33
        %v549 = vld [vmem:[%s479] sm:$0xff]
        %v550 = vld [vmem:[%s479 + $0x8] sm:$0xff]
        %v551 = vpack.c.bf16 %v550, %v549
        %v552 = vld [vmem:[#allocation5] sm:$0xf]
        %v553 = vld [vmem:[#allocation5 + $0x4] sm:$0xf]
        %v554 = vld [vmem:[#allocation5 + $0x8] sm:$0xf]
        %v555 = vld [vmem:[#allocation5 + $0xc] sm:$0xf]
        %v556 = vld [vmem:[#allocation5 + $0x10] sm:$0xf]
        %v557 = vld [vmem:[#allocation5 + $0x14] sm:$0xf]
        %v558 = vld [vmem:[#allocation5 + $0x18] sm:$0xf]
        %v559 = vld [vmem:[#allocation5 + $0x1c] sm:$0xf]
        %v560 = vld [vmem:[#allocation5 + $0x20] sm:$0xf]
        %v561 = vld [vmem:[#allocation5 + $0x24] sm:$0xf]
        %v562 = vld [vmem:[#allocation5 + $0x28] sm:$0xf]
        %v563 = vld [vmem:[#allocation5 + $0x2c] sm:$0xf]
        %v564 = vld [vmem:[#allocation5 + $0x30] sm:$0xf]
        %v565 = vld [vmem:[#allocation5 + $0x34] sm:$0xf]
        %v566 = vld [vmem:[#allocation5 + $0x38] sm:$0xf]
        %v567 = vld [vmem:[#allocation5 + $0x3c] sm:$0xf]
        %v568 = vld [vmem:[%s2] sm:$0x1]
        %v570 = vlaneseq
        %v571 = vshrl.u32 %v570, 7
        %v572 = vsub.s32 0, %v571
        %v573 = vrot.slane %v568, %v572
        %v591 = vunpack.c.l.b16 %v552
        %v592 = vunpack.c.l.b16 %v553
        %v593 = vunpack.c.l.b16 %v554
        %v594 = vunpack.c.l.b16 %v555
        %v595 = vunpack.c.l.b16 %v556
        %v596 = vunpack.c.l.b16 %v557
        %v597 = vunpack.c.l.b16 %v558
        %v598 = vunpack.c.l.b16 %v559
        %v599 = vunpack.c.l.b16 %v560
        %v600 = vunpack.c.l.b16 %v561
        %v601 = vunpack.c.l.b16 %v562
        %v602 = vunpack.c.l.b16 %v563
        %v603 = vunpack.c.l.b16 %v564
        %v604 = vunpack.c.l.b16 %v565
        %v605 = vunpack.c.l.b16 %v566
        %v606 = vunpack.c.l.b16 %v567
        %v607 = vpack.c.b16 %v592, %v591
        %v608 = vpack.c.b16 %v594, %v593
        %v609 = vpack.c.b16 %v596, %v595
        %v610 = vpack.c.b16 %v598, %v597
        %v611 = vpack.c.b16 %v600, %v599
        %v612 = vpack.c.b16 %v602, %v601
        %v613 = vpack.c.b16 %v604, %v603
        %v614 = vpack.c.b16 %v606, %v605
        %623 = vmatprep.subr.bf16.mxu0 0
        %624 = vmatpush1.bf16.msra.mxu0 %v614
        %625 = vmatprep.subr.bf16.mxu0 0
        %626 = vmatpush1.bf16.msra.mxu0 %v613
        %627 = vmatprep.subr.bf16.mxu0 0
        %628 = vmatpush1.bf16.msra.mxu0 %v612
        %629 = vmatprep.subr.bf16.mxu0 0
        %630 = vmatpush1.bf16.msra.mxu0 %v611
        %631 = vmatprep.subr.bf16.mxu0 0
        %632 = vmatpush1.bf16.msra.mxu0 %v610
        %633 = vmatprep.subr.bf16.mxu0 0
        %634 = vmatpush1.bf16.msra.mxu0 %v609
        %635 = vmatprep.subr.bf16.mxu0 0
        %636 = vmatpush1.bf16.msra.mxu0 %v608
        %637 = vmatprep.subr.bf16.mxu0 0
        %638 = vmatpush1.bf16.msra.mxu0 %v607
        %639 = vmatprep.subr.bf16.mxu0 0
        %640 = vmatpush2.bf16.msra.mxu0 0
        %641 = vmatprep.subr.bf16.mxu0 0
        %642 = vmatpush2.bf16.msra.mxu0 0
        %643 = vmatprep.subr.bf16.mxu0 0
        %644 = vmatpush2.bf16.msra.mxu0 0
        %645 = vmatprep.subr.bf16.mxu0 0
        %646 = vmatpush2.bf16.msra.mxu0 0
        %647 = vmatprep.subr.bf16.mxu0 0
        %648 = vmatpush2.bf16.msra.mxu0 0
        %649 = vmatprep.subr.bf16.mxu0 0
        %650 = vmatpush2.bf16.msra.mxu0 0
        %651 = vmatprep.subr.bf16.mxu0 0
        %652 = vmatpush2.bf16.msra.mxu0 0
        %653 = vmatprep.subr.bf16.mxu0 0
        %654 = vmatpush2.bf16.msra.mxu0 0
        %655 = vmatprep.mubr.bf16.mxu0 0
        %656 = vmatmul.mubr.bf16.gmra.mxu0 %v551
        %v657 = vpop.f32.mrf.mxu0
        %v658 = vadd.f32 %v573, %v657
        %v659 = vpop.f32.mrf.mxu0
        %v660 = vpop.f32.mrf.mxu0
        %v661 = vadd.f32 %v573, %v660
        %v662 = vpop.f32.mrf.mxu0
        %663 = vdwg.mxu0
        %v664 = vmax.f32 %v658, 0.0
        %v665 = vmax.f32 %v661, 0.0
        %v666 = vpack.c.bf16 %v665, %v664
        %v667 = vld [vmem:[#allocation7] sm:$0xf]
        %v668 = vld [vmem:[#allocation7 + $0x4] sm:$0xf]
        %v669 = vld [vmem:[#allocation7 + $0x8] sm:$0xf]
        %v670 = vld [vmem:[#allocation7 + $0xc] sm:$0xf]
        %v671 = vld [vmem:[#allocation7 + $0x10] sm:$0xf]
        %v672 = vld [vmem:[#allocation7 + $0x14] sm:$0xf]
        %v673 = vld [vmem:[#allocation7 + $0x18] sm:$0xf]
        %v674 = vld [vmem:[#allocation7 + $0x1c] sm:$0xf]
        %v675 = vld [vmem:[#allocation7 + $0x20] sm:$0xf]
        %v676 = vld [vmem:[#allocation7 + $0x24] sm:$0xf]
        %v677 = vld [vmem:[#allocation7 + $0x28] sm:$0xf]
        %v678 = vld [vmem:[#allocation7 + $0x2c] sm:$0xf]
        %v679 = vld [vmem:[#allocation7 + $0x30] sm:$0xf]
        %v680 = vld [vmem:[#allocation7 + $0x34] sm:$0xf]
        %v681 = vld [vmem:[#allocation7 + $0x38] sm:$0xf]
        %v682 = vld [vmem:[#allocation7 + $0x3c] sm:$0xf]
        %v683 = vld [vmem:[%s4] sm:$0x1]
        %v685 = vlaneseq
        %v686 = vshrl.u32 %v685, 7
        %v687 = vsub.s32 0, %v686
        %v688 = vrot.slane %v683, %v687
        %v706 = vunpack.c.l.b16 %v667
        %v707 = vunpack.c.l.b16 %v668
        %v708 = vunpack.c.l.b16 %v669
        %v709 = vunpack.c.l.b16 %v670
        %v710 = vunpack.c.l.b16 %v671
        %v711 = vunpack.c.l.b16 %v672
        %v712 = vunpack.c.l.b16 %v673
        %v713 = vunpack.c.l.b16 %v674
        %v714 = vunpack.c.l.b16 %v675
        %v715 = vunpack.c.l.b16 %v676
        %v716 = vunpack.c.l.b16 %v677
        %v717 = vunpack.c.l.b16 %v678
        %v718 = vunpack.c.l.b16 %v679
        %v719 = vunpack.c.l.b16 %v680
        %v720 = vunpack.c.l.b16 %v681
        %v721 = vunpack.c.l.b16 %v682
        %v722 = vpack.c.b16 %v707, %v706
        %v723 = vpack.c.b16 %v709, %v708
        %v724 = vpack.c.b16 %v711, %v710
        %v725 = vpack.c.b16 %v713, %v712
        %v726 = vpack.c.b16 %v715, %v714
        %v727 = vpack.c.b16 %v717, %v716
        %v728 = vpack.c.b16 %v719, %v718
        %v729 = vpack.c.b16 %v721, %v720
        %738 = vmatprep.subr.bf16.mxu0 0
        %739 = vmatpush1.bf16.msra.mxu0 %v729
        %740 = vmatprep.subr.bf16.mxu0 0
        %741 = vmatpush1.bf16.msra.mxu0 %v728
        %742 = vmatprep.subr.bf16.mxu0 0
        %743 = vmatpush1.bf16.msra.mxu0 %v727
        %744 = vmatprep.subr.bf16.mxu0 0
        %745 = vmatpush1.bf16.msra.mxu0 %v726
        %746 = vmatprep.subr.bf16.mxu0 0
        %747 = vmatpush1.bf16.msra.mxu0 %v725
        %748 = vmatprep.subr.bf16.mxu0 0
        %749 = vmatpush1.bf16.msra.mxu0 %v724
        %750 = vmatprep.subr.bf16.mxu0 0
        %751 = vmatpush1.bf16.msra.mxu0 %v723
        %752 = vmatprep.subr.bf16.mxu0 0
        %753 = vmatpush1.bf16.msra.mxu0 %v722
        %754 = vmatprep.subr.bf16.mxu0 0
        %755 = vmatpush2.bf16.msra.mxu0 0
        %756 = vmatprep.subr.bf16.mxu0 0
        %757 = vmatpush2.bf16.msra.mxu0 0
        %758 = vmatprep.subr.bf16.mxu0 0
        %759 = vmatpush2.bf16.msra.mxu0 0
        %760 = vmatprep.subr.bf16.mxu0 0
        %761 = vmatpush2.bf16.msra.mxu0 0
        %762 = vmatprep.subr.bf16.mxu0 0
        %763 = vmatpush2.bf16.msra.mxu0 0
        %764 = vmatprep.subr.bf16.mxu0 0
        %765 = vmatpush2.bf16.msra.mxu0 0
        %766 = vmatprep.subr.bf16.mxu0 0
        %767 = vmatpush2.bf16.msra.mxu0 0
        %768 = vmatprep.subr.bf16.mxu0 0
        %769 = vmatpush2.bf16.msra.mxu0 0
        %770 = vmatprep.mubr.bf16.mxu0 0
        %771 = vmatmul.mubr.bf16.gmra.mxu0 %v666
        %v772 = vpop.f32.mrf.mxu0
        %v773 = vadd.f32 %v688, %v772
        %v774 = vpop.f32.mrf.mxu0
        %v775 = vpop.f32.mrf.mxu0
        %v776 = vadd.f32 %v688, %v775
        %v777 = vpop.f32.mrf.mxu0
        %778 = vdwg.mxu0
        %v779 = vmax.f32 %v773, 0.0
        %v780 = vmax.f32 %v776, 0.0
        %v781 = vpack.c.bf16 %v780, %v779
        %v782 = vld [vmem:[#allocation8] sm:$0xf]
        %v783 = vld [vmem:[#allocation8 + $0x4] sm:$0xf]
        %v784 = vld [vmem:[#allocation8 + $0x8] sm:$0xf]
        %v785 = vld [vmem:[#allocation8 + $0xc] sm:$0xf]
        %v786 = vld [vmem:[#allocation8 + $0x10] sm:$0xf]
        %v787 = vld [vmem:[#allocation8 + $0x14] sm:$0xf]
        %v788 = vld [vmem:[#allocation8 + $0x18] sm:$0xf]
        %v789 = vld [vmem:[#allocation8 + $0x1c] sm:$0xf]
        %v790 = vld [vmem:[#allocation8 + $0x20] sm:$0xf]
        %v791 = vld [vmem:[#allocation8 + $0x24] sm:$0xf]
        %v792 = vld [vmem:[#allocation8 + $0x28] sm:$0xf]
        %v793 = vld [vmem:[#allocation8 + $0x2c] sm:$0xf]
        %v794 = vld [vmem:[#allocation8 + $0x30] sm:$0xf]
        %v795 = vld [vmem:[#allocation8 + $0x34] sm:$0xf]
        %v796 = vld [vmem:[#allocation8 + $0x38] sm:$0xf]
        %v797 = vld [vmem:[#allocation8 + $0x3c] sm:$0xf]
        %v798 = vld [vmem:[%s6] sm:$0x1]
        %v800 = vlaneseq
        %v801 = vshrl.u32 %v800, 7
        %v802 = vsub.s32 0, %v801
        %v803 = vrot.slane %v798, %v802
        %v821 = vunpack.c.l.b16 %v782
        %v822 = vunpack.c.l.b16 %v783
        %v823 = vunpack.c.l.b16 %v784
        %v824 = vunpack.c.l.b16 %v785
        %v825 = vunpack.c.l.b16 %v786
        %v826 = vunpack.c.l.b16 %v787
        %v827 = vunpack.c.l.b16 %v788
        %v828 = vunpack.c.l.b16 %v789
        %v829 = vunpack.c.l.b16 %v790
        %v830 = vunpack.c.l.b16 %v791
        %v831 = vunpack.c.l.b16 %v792
        %v832 = vunpack.c.l.b16 %v793
        %v833 = vunpack.c.l.b16 %v794
        %v834 = vunpack.c.l.b16 %v795
        %v835 = vunpack.c.l.b16 %v796
        %v836 = vunpack.c.l.b16 %v797
        %v837 = vpack.c.b16 %v822, %v821
        %v838 = vpack.c.b16 %v824, %v823
        %v839 = vpack.c.b16 %v826, %v825
        %v840 = vpack.c.b16 %v828, %v827
        %v841 = vpack.c.b16 %v830, %v829
        %v842 = vpack.c.b16 %v832, %v831
        %v843 = vpack.c.b16 %v834, %v833
        %v844 = vpack.c.b16 %v836, %v835
        %853 = vmatprep.subr.bf16.mxu0 0
        %854 = vmatpush1.bf16.msra.mxu0 %v844
        %855 = vmatprep.subr.bf16.mxu0 0
        %856 = vmatpush1.bf16.msra.mxu0 %v843
        %857 = vmatprep.subr.bf16.mxu0 0
        %858 = vmatpush1.bf16.msra.mxu0 %v842
        %859 = vmatprep.subr.bf16.mxu0 0
        %860 = vmatpush1.bf16.msra.mxu0 %v841
        %861 = vmatprep.subr.bf16.mxu0 0
        %862 = vmatpush1.bf16.msra.mxu0 %v840
        %863 = vmatprep.subr.bf16.mxu0 0
        %864 = vmatpush1.bf16.msra.mxu0 %v839
        %865 = vmatprep.subr.bf16.mxu0 0
        %866 = vmatpush1.bf16.msra.mxu0 %v838
        %867 = vmatprep.subr.bf16.mxu0 0
        %868 = vmatpush1.bf16.msra.mxu0 %v837
        %869 = vmatprep.subr.bf16.mxu0 0
        %870 = vmatpush2.bf16.msra.mxu0 0
        %871 = vmatprep.subr.bf16.mxu0 0
        %872 = vmatpush2.bf16.msra.mxu0 0
        %873 = vmatprep.subr.bf16.mxu0 0
        %874 = vmatpush2.bf16.msra.mxu0 0
        %875 = vmatprep.subr.bf16.mxu0 0
        %876 = vmatpush2.bf16.msra.mxu0 0
        %877 = vmatprep.subr.bf16.mxu0 0
        %878 = vmatpush2.bf16.msra.mxu0 0
        %879 = vmatprep.subr.bf16.mxu0 0
        %880 = vmatpush2.bf16.msra.mxu0 0
        %881 = vmatprep.subr.bf16.mxu0 0
        %882 = vmatpush2.bf16.msra.mxu0 0
        %883 = vmatprep.subr.bf16.mxu0 0
        %884 = vmatpush2.bf16.msra.mxu0 0
        %885 = vmatprep.mubr.bf16.mxu0 0
        %886 = vmatmul.mubr.bf16.gmra.mxu0 %v781
        %v887 = vpop.f32.mrf.mxu0
        %v888 = vadd.f32 %v803, %v887
        %v889 = vpop.f32.mrf.mxu0
        %v890 = vpop.f32.mrf.mxu0
        %v891 = vadd.f32 %v803, %v890
        %v892 = vpop.f32.mrf.mxu0
        %893 = vdwg.mxu0
        %v894 = vmax.f32 %v888, 0.0
        %v895 = vmax.f32 %v891, 0.0
        %v896 = vpack.c.bf16 %v895, %v894
        %v897 = vld [vmem:[#allocation10] sm:$0xf]
        %v898 = vld [vmem:[#allocation10 + $0x4] sm:$0xf]
        %v899 = vld [vmem:[#allocation10 + $0x8] sm:$0xf]
        %v900 = vld [vmem:[#allocation10 + $0xc] sm:$0xf]
        %v901 = vld [vmem:[#allocation10 + $0x10] sm:$0xf]
        %v902 = vld [vmem:[#allocation10 + $0x14] sm:$0xf]
        %v903 = vld [vmem:[#allocation10 + $0x18] sm:$0xf]
        %v904 = vld [vmem:[#allocation10 + $0x1c] sm:$0xf]
        %v905 = vld [vmem:[#allocation10 + $0x20] sm:$0xf]
        %v906 = vld [vmem:[#allocation10 + $0x24] sm:$0xf]
        %v907 = vld [vmem:[#allocation10 + $0x28] sm:$0xf]
        %v908 = vld [vmem:[#allocation10 + $0x2c] sm:$0xf]
        %v909 = vld [vmem:[#allocation10 + $0x30] sm:$0xf]
        %v910 = vld [vmem:[#allocation10 + $0x34] sm:$0xf]
        %v911 = vld [vmem:[#allocation10 + $0x38] sm:$0xf]
        %v912 = vld [vmem:[#allocation10 + $0x3c] sm:$0xf]
        %v913 = vld [vmem:[%s8] sm:$0x1]
        %v915 = vlaneseq
        %v916 = vshrl.u32 %v915, 7
        %v917 = vsub.s32 0, %v916
        %v918 = vrot.slane %v913, %v917
        %v936 = vunpack.c.l.b16 %v897
        %v937 = vunpack.c.l.b16 %v898
        %v938 = vunpack.c.l.b16 %v899
        %v939 = vunpack.c.l.b16 %v900
        %v940 = vunpack.c.l.b16 %v901
        %v941 = vunpack.c.l.b16 %v902
        %v942 = vunpack.c.l.b16 %v903
        %v943 = vunpack.c.l.b16 %v904
        %v944 = vunpack.c.l.b16 %v905
        %v945 = vunpack.c.l.b16 %v906
        %v946 = vunpack.c.l.b16 %v907
        %v947 = vunpack.c.l.b16 %v908
        %v948 = vunpack.c.l.b16 %v909
        %v949 = vunpack.c.l.b16 %v910
        %v950 = vunpack.c.l.b16 %v911
        %v951 = vunpack.c.l.b16 %v912
        %v952 = vpack.c.b16 %v937, %v936
        %v953 = vpack.c.b16 %v939, %v938
        %v954 = vpack.c.b16 %v941, %v940
        %v955 = vpack.c.b16 %v943, %v942
        %v956 = vpack.c.b16 %v945, %v944
        %v957 = vpack.c.b16 %v947, %v946
        %v958 = vpack.c.b16 %v949, %v948
        %v959 = vpack.c.b16 %v951, %v950
        %968 = vmatprep.subr.bf16.mxu0 0
        %969 = vmatpush1.bf16.msra.mxu0 %v959
        %970 = vmatprep.subr.bf16.mxu0 0
        %971 = vmatpush1.bf16.msra.mxu0 %v958
        %972 = vmatprep.subr.bf16.mxu0 0
        %973 = vmatpush1.bf16.msra.mxu0 %v957
        %974 = vmatprep.subr.bf16.mxu0 0
        %975 = vmatpush1.bf16.msra.mxu0 %v956
        %976 = vmatprep.subr.bf16.mxu0 0
        %977 = vmatpush1.bf16.msra.mxu0 %v955
        %978 = vmatprep.subr.bf16.mxu0 0
        %979 = vmatpush1.bf16.msra.mxu0 %v954
        %980 = vmatprep.subr.bf16.mxu0 0
        %981 = vmatpush1.bf16.msra.mxu0 %v953
        %982 = vmatprep.subr.bf16.mxu0 0
        %983 = vmatpush1.bf16.msra.mxu0 %v952
        %984 = vmatprep.subr.bf16.mxu0 0
        %985 = vmatpush2.bf16.msra.mxu0 0
        %986 = vmatprep.subr.bf16.mxu0 0
        %987 = vmatpush2.bf16.msra.mxu0 0
        %988 = vmatprep.subr.bf16.mxu0 0
        %989 = vmatpush2.bf16.msra.mxu0 0
        %990 = vmatprep.subr.bf16.mxu0 0
        %991 = vmatpush2.bf16.msra.mxu0 0
        %992 = vmatprep.subr.bf16.mxu0 0
        %993 = vmatpush2.bf16.msra.mxu0 0
        %994 = vmatprep.subr.bf16.mxu0 0
        %995 = vmatpush2.bf16.msra.mxu0 0
        %996 = vmatprep.subr.bf16.mxu0 0
        %997 = vmatpush2.bf16.msra.mxu0 0
        %998 = vmatprep.subr.bf16.mxu0 0
        %999 = vmatpush2.bf16.msra.mxu0 0
        %1000 = vmatprep.mubr.bf16.mxu0 0
        %1001 = vmatmul.mubr.bf16.gmra.mxu0 %v896
        %v1002 = vpop.f32.mrf.mxu0
        %v1003 = vadd.f32 %v918, %v1002
        %v1004 = vpop.f32.mrf.mxu0
        %v1005 = vpop.f32.mrf.mxu0
        %v1006 = vadd.f32 %v918, %v1005
        %v1007 = vpop.f32.mrf.mxu0
        %1008 = vdwg.mxu0
        %v1009 = vmax.f32 %v1003, 0.0
        %v1010 = vmax.f32 %v1006, 0.0
        %v1011 = vpack.c.bf16 %v1010, %v1009
        %v1012 = vld [vmem:[#allocation11] sm:$0xf]
        %v1013 = vld [vmem:[#allocation11 + $0x4] sm:$0xf]
        %v1014 = vld [vmem:[#allocation11 + $0x8] sm:$0xf]
        %v1015 = vld [vmem:[#allocation11 + $0xc] sm:$0xf]
        %v1016 = vld [vmem:[#allocation11 + $0x10] sm:$0xf]
        %v1017 = vld [vmem:[#allocation11 + $0x14] sm:$0xf]
        %v1018 = vld [vmem:[#allocation11 + $0x18] sm:$0xf]
        %v1019 = vld [vmem:[#allocation11 + $0x1c] sm:$0xf]
        %v1020 = vld [vmem:[#allocation11 + $0x20] sm:$0xf]
        %v1021 = vld [vmem:[#allocation11 + $0x24] sm:$0xf]
        %v1022 = vld [vmem:[#allocation11 + $0x28] sm:$0xf]
        %v1023 = vld [vmem:[#allocation11 + $0x2c] sm:$0xf]
        %v1024 = vld [vmem:[#allocation11 + $0x30] sm:$0xf]
        %v1025 = vld [vmem:[#allocation11 + $0x34] sm:$0xf]
        %v1026 = vld [vmem:[#allocation11 + $0x38] sm:$0xf]
        %v1027 = vld [vmem:[#allocation11 + $0x3c] sm:$0xf]
        %v1028 = vld [vmem:[%s10] sm:$0x1]
        %v1030 = vlaneseq
        %v1031 = vshrl.u32 %v1030, 7
        %v1032 = vsub.s32 0, %v1031
        %v1033 = vrot.slane %v1028, %v1032
        %v1051 = vunpack.c.l.b16 %v1012
        %v1052 = vunpack.c.l.b16 %v1013
        %v1053 = vunpack.c.l.b16 %v1014
        %v1054 = vunpack.c.l.b16 %v1015
        %v1055 = vunpack.c.l.b16 %v1016
        %v1056 = vunpack.c.l.b16 %v1017
        %v1057 = vunpack.c.l.b16 %v1018
        %v1058 = vunpack.c.l.b16 %v1019
        %v1059 = vunpack.c.l.b16 %v1020
        %v1060 = vunpack.c.l.b16 %v1021
        %v1061 = vunpack.c.l.b16 %v1022
        %v1062 = vunpack.c.l.b16 %v1023
        %v1063 = vunpack.c.l.b16 %v1024
        %v1064 = vunpack.c.l.b16 %v1025
        %v1065 = vunpack.c.l.b16 %v1026
        %v1066 = vunpack.c.l.b16 %v1027
        %v1067 = vpack.c.b16 %v1052, %v1051
        %v1068 = vpack.c.b16 %v1054, %v1053
        %v1069 = vpack.c.b16 %v1056, %v1055
        %v1070 = vpack.c.b16 %v1058, %v1057
        %v1071 = vpack.c.b16 %v1060, %v1059
        %v1072 = vpack.c.b16 %v1062, %v1061
        %v1073 = vpack.c.b16 %v1064, %v1063
        %v1074 = vpack.c.b16 %v1066, %v1065
        %1083 = vmatprep.subr.bf16.mxu0 0
        %1084 = vmatpush1.bf16.msra.mxu0 %v1074
        %1085 = vmatprep.subr.bf16.mxu0 0
        %1086 = vmatpush1.bf16.msra.mxu0 %v1073
        %1087 = vmatprep.subr.bf16.mxu0 0
        %1088 = vmatpush1.bf16.msra.mxu0 %v1072
        %1089 = vmatprep.subr.bf16.mxu0 0
        %1090 = vmatpush1.bf16.msra.mxu0 %v1071
        %1091 = vmatprep.subr.bf16.mxu0 0
        %1092 = vmatpush1.bf16.msra.mxu0 %v1070
        %1093 = vmatprep.subr.bf16.mxu0 0
        %1094 = vmatpush1.bf16.msra.mxu0 %v1069
        %1095 = vmatprep.subr.bf16.mxu0 0
        %1096 = vmatpush1.bf16.msra.mxu0 %v1068
        %1097 = vmatprep.subr.bf16.mxu0 0
        %1098 = vmatpush1.bf16.msra.mxu0 %v1067
        %1099 = vmatprep.subr.bf16.mxu0 0
        %1100 = vmatpush2.bf16.msra.mxu0 0
        %1101 = vmatprep.subr.bf16.mxu0 0
        %1102 = vmatpush2.bf16.msra.mxu0 0
        %1103 = vmatprep.subr.bf16.mxu0 0
        %1104 = vmatpush2.bf16.msra.mxu0 0
        %1105 = vmatprep.subr.bf16.mxu0 0
        %1106 = vmatpush2.bf16.msra.mxu0 0
        %1107 = vmatprep.subr.bf16.mxu0 0
        %1108 = vmatpush2.bf16.msra.mxu0 0
        %1109 = vmatprep.subr.bf16.mxu0 0
        %1110 = vmatpush2.bf16.msra.mxu0 0
        %1111 = vmatprep.subr.bf16.mxu0 0
        %1112 = vmatpush2.bf16.msra.mxu0 0
        %1113 = vmatprep.subr.bf16.mxu0 0
        %1114 = vmatpush2.bf16.msra.mxu0 0
        %1115 = vmatprep.mubr.bf16.mxu0 0
        %1116 = vmatmul.mubr.bf16.gmra.mxu0 %v1011
        %v1117 = vpop.f32.mrf.mxu0
        %v1118 = vadd.f32 %v1033, %v1117
        %v1119 = vpop.f32.mrf.mxu0
        %v1120 = vpop.f32.mrf.mxu0
        %v1121 = vadd.f32 %v1033, %v1120
        %v1122 = vpop.f32.mrf.mxu0
        %1123 = vdwg.mxu0
        %v1124 = vmax.f32 %v1118, 0.0
        %v1125 = vmax.f32 %v1121, 0.0
        %v1126 = vpack.c.bf16 %v1125, %v1124
        %v1127 = vld [vmem:[#allocation13] sm:$0xf]
        %v1128 = vld [vmem:[#allocation13 + $0x4] sm:$0xf]
        %v1129 = vld [vmem:[#allocation13 + $0x8] sm:$0xf]
        %v1130 = vld [vmem:[#allocation13 + $0xc] sm:$0xf]
        %v1131 = vld [vmem:[#allocation13 + $0x10] sm:$0xf]
        %v1132 = vld [vmem:[#allocation13 + $0x14] sm:$0xf]
        %v1133 = vld [vmem:[#allocation13 + $0x18] sm:$0xf]
        %v1134 = vld [vmem:[#allocation13 + $0x1c] sm:$0xf]
        %v1135 = vld [vmem:[#allocation13 + $0x20] sm:$0xf]
        %v1136 = vld [vmem:[#allocation13 + $0x24] sm:$0xf]
        %v1137 = vld [vmem:[#allocation13 + $0x28] sm:$0xf]
        %v1138 = vld [vmem:[#allocation13 + $0x2c] sm:$0xf]
        %v1139 = vld [vmem:[#allocation13 + $0x30] sm:$0xf]
        %v1140 = vld [vmem:[#allocation13 + $0x34] sm:$0xf]
        %v1141 = vld [vmem:[#allocation13 + $0x38] sm:$0xf]
        %v1142 = vld [vmem:[#allocation13 + $0x3c] sm:$0xf]
        %v1143 = vld [vmem:[%s12] sm:$0x1]
        %v1145 = vlaneseq
        %v1146 = vshrl.u32 %v1145, 7
        %v1147 = vsub.s32 0, %v1146
        %v1148 = vrot.slane %v1143, %v1147
        %v1166 = vunpack.c.l.b16 %v1127
        %v1167 = vunpack.c.l.b16 %v1128
        %v1168 = vunpack.c.l.b16 %v1129
        %v1169 = vunpack.c.l.b16 %v1130
        %v1170 = vunpack.c.l.b16 %v1131
        %v1171 = vunpack.c.l.b16 %v1132
        %v1172 = vunpack.c.l.b16 %v1133
        %v1173 = vunpack.c.l.b16 %v1134
        %v1174 = vunpack.c.l.b16 %v1135
        %v1175 = vunpack.c.l.b16 %v1136
        %v1176 = vunpack.c.l.b16 %v1137
        %v1177 = vunpack.c.l.b16 %v1138
        %v1178 = vunpack.c.l.b16 %v1139
        %v1179 = vunpack.c.l.b16 %v1140
        %v1180 = vunpack.c.l.b16 %v1141
        %v1181 = vunpack.c.l.b16 %v1142
        %v1182 = vpack.c.b16 %v1167, %v1166
        %v1183 = vpack.c.b16 %v1169, %v1168
        %v1184 = vpack.c.b16 %v1171, %v1170
        %v1185 = vpack.c.b16 %v1173, %v1172
        %v1186 = vpack.c.b16 %v1175, %v1174
        %v1187 = vpack.c.b16 %v1177, %v1176
        %v1188 = vpack.c.b16 %v1179, %v1178
        %v1189 = vpack.c.b16 %v1181, %v1180
        %1198 = vmatprep.subr.bf16.mxu0 0
        %1199 = vmatpush1.bf16.msra.mxu0 %v1189
        %1200 = vmatprep.subr.bf16.mxu0 0
        %1201 = vmatpush1.bf16.msra.mxu0 %v1188
        %1202 = vmatprep.subr.bf16.mxu0 0
        %1203 = vmatpush1.bf16.msra.mxu0 %v1187
        %1204 = vmatprep.subr.bf16.mxu0 0
        %1205 = vmatpush1.bf16.msra.mxu0 %v1186
        %1206 = vmatprep.subr.bf16.mxu0 0
        %1207 = vmatpush1.bf16.msra.mxu0 %v1185
        %1208 = vmatprep.subr.bf16.mxu0 0
        %1209 = vmatpush1.bf16.msra.mxu0 %v1184
        %1210 = vmatprep.subr.bf16.mxu0 0
        %1211 = vmatpush1.bf16.msra.mxu0 %v1183
        %1212 = vmatprep.subr.bf16.mxu0 0
        %1213 = vmatpush1.bf16.msra.mxu0 %v1182
        %1214 = vmatprep.subr.bf16.mxu0 0
        %1215 = vmatpush2.bf16.msra.mxu0 0
        %1216 = vmatprep.subr.bf16.mxu0 0
        %1217 = vmatpush2.bf16.msra.mxu0 0
        %1218 = vmatprep.subr.bf16.mxu0 0
        %1219 = vmatpush2.bf16.msra.mxu0 0
        %1220 = vmatprep.subr.bf16.mxu0 0
        %1221 = vmatpush2.bf16.msra.mxu0 0
        %1222 = vmatprep.subr.bf16.mxu0 0
        %1223 = vmatpush2.bf16.msra.mxu0 0
        %1224 = vmatprep.subr.bf16.mxu0 0
        %1225 = vmatpush2.bf16.msra.mxu0 0
        %1226 = vmatprep.subr.bf16.mxu0 0
        %1227 = vmatpush2.bf16.msra.mxu0 0
        %1228 = vmatprep.subr.bf16.mxu0 0
        %1229 = vmatpush2.bf16.msra.mxu0 0
        %1230 = vmatprep.mubr.bf16.mxu0 0
        %1231 = vmatmul.mubr.bf16.gmra.mxu0 %v1126
        %v1232 = vpop.f32.mrf.mxu0
        %v1233 = vadd.f32 %v1148, %v1232
        %v1234 = vpop.f32.mrf.mxu0
        %v1235 = vpop.f32.mrf.mxu0
        %v1236 = vadd.f32 %v1148, %v1235
        %v1237 = vpop.f32.mrf.mxu0
        %1238 = vdwg.mxu0
        %1239 = vst [vmem:[%s545] sm:$0xff] %v1233
        %1240 = vst [vmem:[%s545 + $0x8] sm:$0xff] %v1236
        %s1241 = sand.u32 %s319, 1
        %s1242 = scalar_lea.sflag [#allocation4], %s1241
        %s1243 = sand.u32 %s319, 1
        %s1244 = smul.addr %s1243, 16
        %s1245 = scalar_lea.vmem [#allocation14], %s1244
        // Predicated region
        $region101: #{tpu_custom_call.1} parent=71 // pred_check
          %p1246 = pneg %p329
        $region102: #{tpu_custom_call.1} parent=71 // pred_check_branch
          %1248 = sbr.rel (%p1246) target = $region104
        $region103: #{tpu_custom_call.1} parent=71 // pred_region
          %s1249 = smul.u32 2, %s33
          %s1251 = ssub.s32 256, 256
          %1252 = vsyncadd %s1242, %s1251
          %s1253 = smul.addr %s1249, 128
          %s1254 = scalar_lea.hbm %s13, %s1253
          %s1255 = sshll.u32 %s1245, 4
          %s1256 = int_to_ptr.vmem [resolvable:$true] %s1255
          %1261 = dma.vmem_to_hbm [thread:$0]  %s1256, 256, %s1254, %s1242, 128, 128, 8
        $region104: #{tpu_custom_call.1} parent=71 // pred_fallthru
          _
      $region72: #{tpu_custom_call.1} parent=5 // pred_fallthru
        _
      %p1262 = scmp.le.s32.totalorder 2, %s28
      // Predicated region
      $region105: #{tpu_custom_call.1} parent=5 // pred_check
        %p1263 = pneg %p1262
      $region106: #{tpu_custom_call.1} parent=5 // pred_check_branch
        %1265 = sbr.rel (%p1263) target = $region108
      $region107: #{tpu_custom_call.1} parent=5 // pred_region
        %s1266 = ssub.s32 %s28, 2
        // Predicated region
        $region109: #{tpu_custom_call.1} parent=107 // pred_check
          %p1267 = pneg %p335
        $region110: #{tpu_custom_call.1} parent=107 // pred_check_branch
          %1269 = sbr.rel (%p1267) target = $region112
        $region111: #{tpu_custom_call.1} parent=107 // pred_region
          %s1270 = sand.u32 %s320, 1
          %s1271 = scalar_lea.sflag [#allocation4], %s1270
          %s1272 = sand.u32 %s320, 1
          %s1273 = smul.addr %s1272, 16
          %s1274 = scalar_lea.vmem [#allocation14], %s1273
          %1275 = dma.done %s1271, 256
        $region112: #{tpu_custom_call.1} parent=107 // pred_fallthru
          _
      $region108: #{tpu_custom_call.1} parent=5 // pred_fallthru
        _
    $region6: #{tpu_custom_call.1} parent=1 // loop_footer
      %s32 = sadd.s32 1, %s28
    $region7: #{tpu_custom_call.1} parent=1 // loop_footer_branch
      %27 = sbr.rel target = $region3
    $region8: #{tpu_custom_call.1} parent=1 // loop_exit
      _
    %1276 = vsyncpa [#allocation3], 1
    %s1277 = scalar_lea.sflag [#allocation3], 1
    %1278 = vsyncpa %s1277, 1
    %1279 = vsyncpa [#allocation6], 1
    %1280 = vsyncpa [#allocation9], 1
    %1281 = vsyncpa [#allocation12], 1
    %1282 = vsyncpa [#allocation4], 1
    %s1283 = scalar_lea.sflag [#allocation4], 1
    %1284 = vsyncpa %s1283, 1

</llo_original>
